<compile_context>
chip_gen: v5e
topology: v5e:2x2
jax: 0.10.0
libtpu: 0.0.40
codegen_flags: <defaults>
</compile_context>

<pallas_src>
import functools

import jax
import jax.numpy as jnp
from jax import lax
from jax.experimental import pallas as pl
from jax.experimental.pallas import tpu as pltpu


# ---------------------------------------------------------------------------
# Fused GEMM + bias (+ optional ReLU) kernel — the hot path for every conv.
# ---------------------------------------------------------------------------
def _gemm_bias_kernel(x_ref, w_ref, b_ref, o_ref, *, relu):
    # x_ref: (TM, K) bf16, w_ref: (K, TN) bf16, b_ref: (1, TN) f32,
    # o_ref: (TM, TN) f32.  Single MXU contraction over K, f32 accumulate.
    acc = jnp.dot(x_ref[...], w_ref[...], preferred_element_type=jnp.float32)
    acc = acc + b_ref[...]
    if relu:
        acc = jnp.maximum(acc, 0.0)
    o_ref[...] = acc.astype(o_ref.dtype)


def _pick_tile(dim, pref):
    """Largest convenient tile <= pref that divides dim (or the full dim)."""
    if dim <= pref:
        return dim
    for t in (pref, pref // 2, pref // 4, 128, 64, 32, 16, 8):
        if t > 0 and dim % t == 0:
            return t
    return dim  # fall back to a single (full) block


def _gemm_bias(x2d, w2d, b2d, *, relu):
    """(M, K) bf16 @ (K, Cout) bf16 + bias, optional ReLU -> (M, Cout) f32."""
    m, k = x2d.shape
    k2, cout = w2d.shape
    assert k == k2, (k, k2)
    tm = _pick_tile(m, 256)
    tn = _pick_tile(cout, 256)
    grid = (m // tm, cout // tn)
    return pl.pallas_call(
        functools.partial(_gemm_bias_kernel, relu=relu),
        out_shape=jax.ShapeDtypeStruct((m, cout), jnp.float32),
        grid=grid,
        in_specs=[
            pl.BlockSpec((tm, k), lambda i, j: (i, 0)),
            pl.BlockSpec((k, tn), lambda i, j: (0, j)),
            pl.BlockSpec((1, tn), lambda i, j: (0, j)),
        ],
        out_specs=pl.BlockSpec((tm, tn), lambda i, j: (i, j)),
        compiler_params=pltpu.CompilerParams(
            dimension_semantics=("parallel", "parallel"),
            vmem_limit_bytes=48 << 20),
    )(x2d, w2d, b2d)


# ---------------------------------------------------------------------------
# Conv 3x3 (stride 1, pad 1) + bias (+ optional ReLU) via a single fused GEMM
# ---------------------------------------------------------------------------
def _im2col_bf16(x_nhwc):
    """(N,H,W,C) -> (N*H*W, 9*C) bf16 im2col slab (taps stacked on channels)."""
    n, h, w, c = x_nhwc.shape
    xp = jnp.pad(x_nhwc.astype(jnp.bfloat16), ((0, 0), (1, 1), (1, 1), (0, 0)))
    taps = [xp[:, dh:dh + h, dw:dw + w, :] for dh in range(3) for dw in range(3)]
    cols = jnp.concatenate(taps, axis=-1)          # (N, H, W, 9*C)
    return cols.reshape(n * h * w, 9 * c)


@functools.partial(jax.jit, static_argnames=("relu",))
def conv3x3(x_nhwc, w2d, b2d, relu=True):
    """x: (N,H,W,Cin) f32; w2d: (9*Cin,Cout) bf16; b2d: (1,Cout) f32."""
    n, h, w, _ = x_nhwc.shape
    k9, cout = w2d.shape
    cin = k9 // 9
    if h == 1 and w == 1:
        # With a 3x3 kernel, pad=1 and a 1x1 spatial map, only the center tap
        # sees non-padding data -> plain (N, Cin) x (Cin, Cout) GEMM.
        wc = lax.slice_in_dim(w2d, 4 * cin, 5 * cin, axis=0)   # tap (dh=1,dw=1)
        x2d = x_nhwc.reshape(n, cin).astype(jnp.bfloat16)
        out2d = _gemm_bias(x2d, wc, b2d, relu=relu)
    else:
        x2d = _im2col_bf16(x_nhwc)                              # (N*H*W, 9*Cin)
        out2d = _gemm_bias(x2d, w2d, b2d, relu=relu)
    return out2d.reshape(n, h, w, cout)


# ---------------------------------------------------------------------------
# MaxPool 2x2 stride 2 with flat indices (PyTorch return_indices semantics)
# ---------------------------------------------------------------------------
def _maxpool_kernel(x00_ref, x01_ref, x10_ref, x11_ref, o_ref, ind_ref, *, w_in):
    # each x??_ref / o_ref / ind_ref: (1, Ho, Wo, C)
    shape = o_ref.shape
    hgrid = lax.broadcasted_iota(jnp.int32, shape, 1)
    wgrid = lax.broadcasted_iota(jnp.int32, shape, 2)
    bh = 2 * hgrid
    bw = 2 * wgrid
    cands = [
        (x00_ref[...], bh * w_in + bw),
        (x01_ref[...], bh * w_in + bw + 1),
        (x10_ref[...], (bh + 1) * w_in + bw),
        (x11_ref[...], (bh + 1) * w_in + bw + 1),
    ]
    v, idx = cands[0]
    for cv, ci in cands[1:]:
        take = cv > v            # strict '>' => first max wins (torch convention)
        idx = jnp.where(take, ci, idx)
        v = jnp.maximum(v, cv)
    o_ref[...] = v.astype(o_ref.dtype)
    ind_ref[...] = idx


@jax.jit
def maxpool2x2(x_nhwc):
    """Returns (pooled (N,Ho,Wo,C) f32, indices (N,Ho,Wo,C) int32)."""
    n, h, w, c = x_nhwc.shape
    ho, wo = h // 2, w // 2
    # TODO(synk): corner extraction kept in glue (4 strided slices) for
    # lowering robustness; negligible HBM cost at these activation sizes.
    x00 = x_nhwc[:, 0::2, 0::2, :]
    x01 = x_nhwc[:, 0::2, 1::2, :]
    x10 = x_nhwc[:, 1::2, 0::2, :]
    x11 = x_nhwc[:, 1::2, 1::2, :]
    spec = pl.BlockSpec((1, ho, wo, c), lambda i: (i, 0, 0, 0))
    pooled, idx = pl.pallas_call(
        functools.partial(_maxpool_kernel, w_in=w),
        out_shape=(jax.ShapeDtypeStruct((n, ho, wo, c), jnp.float32),
                   jax.ShapeDtypeStruct((n, ho, wo, c), jnp.int32)),
        grid=(n,),
        in_specs=[spec, spec, spec, spec],
        out_specs=(spec, spec),
        compiler_params=pltpu.CompilerParams(
            dimension_semantics=("parallel",)),
    )(x00, x01, x10, x11)
    return pooled, idx


# ---------------------------------------------------------------------------
# Encoder forward (mirrors the PyTorch module's forward exactly)
# ---------------------------------------------------------------------------
def encoder_forward(x_nchw, params):
    x = jnp.transpose(x_nchw, (0, 2, 3, 1)).astype(jnp.float32)  # NCHW -> NHWC
    pooling_info = {}
    layer_info = {}
    li = 0
    for block in range(1, 6):
        n_convs = 2 if block <= 2 else 3
        for _ in range(n_convs):
            w2d, b2d = params["vgg"][li]
            x = conv3x3(x, w2d, b2d, relu=True)   # Conv2d + ReLU (vgg[i], vgg[i+1])
            li += 1
        shape_nchw = (x.shape[0], x.shape[3], x.shape[1], x.shape[2])
        layer_info[block] = {"value": jnp.transpose(x, (0, 3, 1, 2))}
        x, ind = maxpool2x2(x)
        pooling_info[block] = {
            "kernel_size": 2, "stride": 2, "padding": 0,
            "output_size": shape_nchw,
            # TODO(synk): torch returns int64 indices; int32 used on TPU.
            "indices": jnp.transpose(ind, (0, 3, 1, 2)),
        }
    w6, b6 = params["conv6"]
    x = conv3x3(x, w6, b6, relu=False)             # conv6: no activation
    return jnp.transpose(x, (0, 3, 1, 2)), pooling_info, layer_info


# ---------------------------------------------------------------------------
# Parameter init (synthetic; no pretrained-VGG checkpoint load) and one-time
# weight preparation (torch layout -> (9*Cin, Cout) bf16 GEMM layout).
# ---------------------------------------------------------------------------
def init_params(key):
    cfgs = [(3, 64), (64, 64),
            (64, 128), (128, 128),
            (128, 256), (256, 256), (256, 256),
            (256, 512), (512, 512), (512, 512),
            (512, 512), (512, 512), (512, 512)]
    params = {"vgg": []}
    for cin, cout in cfgs:
        key, kw, kb = jax.random.split(key, 3)
        std = (2.0 / (cin * 9)) ** 0.5
        w = jax.random.normal(kw, (cout, cin, 3, 3), jnp.float32) * std
        b = jax.random.normal(kb, (cout,), jnp.float32) * 0.01
        params["vgg"].append((w, b))
    key, kw, kb = jax.random.split(key, 3)
    std = (2.0 / (512 * 9)) ** 0.5
    params["conv6"] = (
        jax.random.normal(kw, (4096, 512, 3, 3), jnp.float32) * std,
        jax.random.normal(kb, (4096,), jnp.float32) * 0.01,
    )
    return params


def _prep_conv(w_torch, b):
    cout, cin = w_torch.shape[0], w_torch.shape[1]
    # row index = (kh*3 + kw)*cin + ci  — must match _im2col_bf16 tap order.
    w2d = jnp.transpose(w_torch, (2, 3, 1, 0)).reshape(9 * cin, cout)
    return w2d.astype(jnp.bfloat16), b.reshape(1, cout).astype(jnp.float32)


def prepare_params(params):
    return {
        "vgg": [_prep_conv(w, b) for (w, b) in params["vgg"]],
        "conv6": _prep_conv(*params["conv6"]),
    }


if __name__ == "__main__":
    key = jax.random.PRNGKey(0)
    key, kx = jax.random.split(key)
    params = prepare_params(init_params(key))

    # Spatial must be divisible by 2^5 (five pools); 3 input channels (VGG).
    x = jax.random.normal(kx, (2, 3, 32, 32), jnp.float32)

    out, pooling_info, layer_info = encoder_forward(x, params)
    out = jax.block_until_ready(out)
    for blk in pooling_info:
        jax.block_until_ready(pooling_info[blk]["indices"])
        jax.block_until_ready(layer_info[blk]["value"])

    assert out.shape == (2, 4096, 1, 1), out.shape
    assert bool(jnp.all(jnp.isfinite(out)))
    print("KERNEL_OK")
</pallas_src>

<mosaic_0001>
module attributes {stable_mosaic.version = 11 : i64} {
  func.func @_gemm_bias_kernel(%arg0: i32, %arg1: i32, %arg2: memref<256x27xbf16, #tpu.memory_space<vmem>>, %arg3: memref<27x64xbf16, #tpu.memory_space<vmem>>, %arg4: memref<1x64xf32, #tpu.memory_space<vmem>>, %arg5: memref<256x64xf32, #tpu.memory_space<vmem>>) attributes {dimension_semantics = [#tpu.dimension_semantics<parallel>, #tpu.dimension_semantics<parallel>], iteration_bounds = array<i64: 8, 1>, scalar_prefetch = 0 : i64, scratch_operands = 0 : i64, tpu.core_type = #tpu.core_type<tc>, window_params = [{transform_indices = @transform_0, window_bounds = array<i64: 256, 27>}, {transform_indices = @transform_1, window_bounds = array<i64: 27, 64>}, {transform_indices = @transform_2, window_bounds = array<i64: 1, 64>}, {transform_indices = @transform_3, window_bounds = array<i64: 256, 64>}]} {
    %c0 = arith.constant 0 : index
    %c0_0 = arith.constant 0 : index
    %0 = vector.load %arg2[%c0, %c0_0] : memref<256x27xbf16, #tpu.memory_space<vmem>>, vector<256x27xbf16>
    %c0_1 = arith.constant 0 : index
    %c0_2 = arith.constant 0 : index
    %1 = vector.load %arg3[%c0_1, %c0_2] : memref<27x64xbf16, #tpu.memory_space<vmem>>, vector<27x64xbf16>
    %cst = arith.constant dense<0.000000e+00> : vector<256x64xf32>
    %2 = tpu.matmul %0, %1, %cst {dimension_numbers = #tpu.dot_dimension_numbers<[1], [0], [0], [1], [0, 0, 1, 1], [], []>} : vector<256x27xbf16>, vector<27x64xbf16>, vector<256x64xf32> -> vector<256x64xf32>
    %c0_3 = arith.constant 0 : index
    %c0_4 = arith.constant 0 : index
    %3 = vector.load %arg4[%c0_3, %c0_4] : memref<1x64xf32, #tpu.memory_space<vmem>>, vector<1x64xf32>
    %4 = vector.broadcast %3 : vector<1x64xf32> to vector<256x64xf32>
    %5 = arith.addf %2, %4 : vector<256x64xf32>
    %cst_5 = arith.constant 0.000000e+00 : f32
    %6 = vector.broadcast %cst_5 : f32 to vector<256x64xf32>
    %7 = arith.maximumf %5, %6 : vector<256x64xf32>
    %c0_6 = arith.constant 0 : index
    %c0_7 = arith.constant 0 : index
    %8 = vector.load %arg5[%c0_6, %c0_7] : memref<256x64xf32, #tpu.memory_space<vmem>>, vector<256x64xf32>
    tpu.vector_store %arg5[%c0_6, %c0_7], %7 {strides = array<i32>} : memref<256x64xf32, #tpu.memory_space<vmem>>, vector<256x64xf32>,
    return
  }
  func.func @transform_0(%arg0: i32, %arg1: i32) -> (i32, i32) {
    %c0_i32 = arith.constant 0 : i32
    %c0_i32_0 = arith.constant 0 : i32
    return %arg0, %c0_i32 : i32, i32
  }
  func.func @transform_1(%arg0: i32, %arg1: i32) -> (i32, i32) {
    %c0_i32 = arith.constant 0 : i32
    %c0_i32_0 = arith.constant 0 : i32
    return %c0_i32, %arg1 : i32, i32
  }
  func.func @transform_2(%arg0: i32, %arg1: i32) -> (i32, i32) {
    %c0_i32 = arith.constant 0 : i32
    %c0_i32_0 = arith.constant 0 : i32
    return %c0_i32, %arg1 : i32, i32
  }
  func.func @transform_3(%arg0: i32, %arg1: i32) -> (i32, i32) {
    %c0_i32 = arith.constant 0 : i32
    return %arg0, %arg1 : i32, i32
  }
}

</mosaic_0001>

<llo_original>
// kernel: conv3x3.1
$region0: #{conv3x3.1}
  #allocation0 [shape = 'u32[]', space=smem, size = 0x4, offset = 0x4, fixed_abs, tag = 'smem constant byte address 0x4 - core index']
  #allocation1 [shape = 'u32[72,128]{1,0:T(1,128)}', space=vmem, size = 0x9000, scoped, tag = 'internal scratch']
  %s0 = inlined_call_operand.vmem [shape: bf16[2048,27], index: 0, kind: input, shape index: {}]
  %s1 = inlined_call_operand.vmem [shape: bf16[27,64], index: 1, kind: input, shape index: {}]
  %s2 = inlined_call_operand.vmem [shape: f32[1,64], index: 2, kind: input, shape index: {}]
  %s3 = inlined_call_operand.hbm [shape: f32[2048,64], index: 3, kind: output, shape index: {}]
  %s4 = sld [smem:[#allocation0]]
  $region45: #{conv3x3.1} parent=0
    _
  %s6 = ssub.s32 1, %s4
  %s7 = scalar_select 0, %s6, %s4
  $region1: #{conv3x3.1} parent=0
    #allocation2 [shape = 'u8[262144]{0}', space=vmem, size = 0x40000, scoped, tag = 'output window, operand 0']
    #allocation3 [shape = 's32[2]{0}', space=sflag, size = 0x8, scoped, tag = 'scoped memory for conv3x3.1']
    %8 = vsyncpa [#allocation3], 0
    %s9 = scalar_lea.sflag [#allocation3], 1
    %10 = vsyncpa %s9, 0
    loop: start=0, step=1, limit=10
    $region2: #{conv3x3.1} parent=1 // loop_pre_header
      _
    $region3: #{conv3x3.1} parent=1 // loop_header
      %s12 = sphi 0, %s16
      %p13 = scmp.ge.s32.totalorder %s12, 10
      %s19 = sphi 0, %s31
      %s20 = sphi 0, %s27
      %s21 = sphi 0, %s19
      %s22 = sphi 0, %s20
      %s23 = sphi 0, %s21
      %s24 = sphi 0, %s22
      %s34 = sphi 0, %s36
      %s37 = sphi 0, %s34
      %s38 = sphi 0, %s37
      %s54 = sphi 0, %s38
      %s60 = sphi 0, %s62
      %s63 = sphi 0, %s60
      %s64 = sphi 0, %s63
      %s80 = sphi 0, %s64
      %s86 = sphi 0, %s88
      %s89 = sphi 0, %s86
      %s90 = sphi 0, %s89
      %s106 = sphi 0, %s90
      %s114 = sphi 0, %s116
      %s117 = sphi 0, %s114
      %s118 = sphi 0, %s117
      %s134 = sphi 0, %s118
    $region4: #{conv3x3.1} parent=1 // loop_header_branch
      %15 = sbr.rel (%p13) target = $region8
    $region5: #{conv3x3.1} parent=1 // loop_body
      %s17 = ssub.s32 %s12, 1
      %s18 = ssub.s32 %s12, 2
      %s25 = sadd.s32 1, %s20
      %p26 = scmp.ge.s32.totalorder %s25, 1
      %s27 = scalar_select %p26, 0, %s25
      %s28 = sadd.s32 1, %s19
      %s29 = scalar_select %p26, %s28, %s19
      %p30 = scmp.ge.s32.totalorder %s29, 8
      %s31 = scalar_select %p30, 0, %s29
      %s32 = ssub.s32 %s19, %s31
      %p33 = scmp.eq.s32.totalorder %s32, 0
      %s35 = sadd.s32 %s34, 1
      %s36 = scalar_select %p33, %s34, %s35
      %p39 = pneg %p33
      %p40 = scmp.eq.s32.totalorder %s12, 7
      %p41 = por %p39, %p40
      %p42 = scmp.ne.s32.totalorder %s34, %s37
      %p43 = scmp.eq.s32.totalorder %s12, 0
      %p44 = por %p42, %p43
      %p45 = scmp.ne.s32.totalorder %s34, %s37
      %p46 = scmp.eq.s32.totalorder %s17, 7
      %p47 = por %p45, %p46
      %p48 = scmp.ne.s32.totalorder %s37, %s38
      %p49 = scmp.eq.s32.totalorder %s17, 0
      %p50 = por %p48, %p49
      %p51 = scmp.ne.s32.totalorder %s37, %s38
      %p52 = scmp.eq.s32.totalorder %s18, 7
      %p53 = por %p51, %p52
      %p55 = scmp.ne.s32.totalorder %s38, %s54
      %p56 = scmp.eq.s32.totalorder %s18, 0
      %p57 = por %p55, %p56
      %s58 = ssub.s32 %s20, %s27
      %p59 = scmp.eq.s32.totalorder %s58, 0
      %s61 = sadd.s32 %s60, 1
      %s62 = scalar_select %p59, %s60, %s61
      %p65 = pneg %p59
      %p66 = scmp.eq.s32.totalorder %s12, 7
      %p67 = por %p65, %p66
      %p68 = scmp.ne.s32.totalorder %s60, %s63
      %p69 = scmp.eq.s32.totalorder %s12, 0
      %p70 = por %p68, %p69
      %p71 = scmp.ne.s32.totalorder %s60, %s63
      %p72 = scmp.eq.s32.totalorder %s17, 7
      %p73 = por %p71, %p72
      %p74 = scmp.ne.s32.totalorder %s63, %s64
      %p75 = scmp.eq.s32.totalorder %s17, 0
      %p76 = por %p74, %p75
      %p77 = scmp.ne.s32.totalorder %s63, %s64
      %p78 = scmp.eq.s32.totalorder %s18, 7
      %p79 = por %p77, %p78
      %p81 = scmp.ne.s32.totalorder %s64, %s80
      %p82 = scmp.eq.s32.totalorder %s18, 0
      %p83 = por %p81, %p82
      %s84 = ssub.s32 %s20, %s27
      %p85 = scmp.eq.s32.totalorder %s84, 0
      %s87 = sadd.s32 %s86, 1
      %s88 = scalar_select %p85, %s86, %s87
      %p91 = pneg %p85
      %p92 = scmp.eq.s32.totalorder %s12, 7
      %p93 = por %p91, %p92
      %p94 = scmp.ne.s32.totalorder %s86, %s89
      %p95 = scmp.eq.s32.totalorder %s12, 0
      %p96 = por %p94, %p95
      %p97 = scmp.ne.s32.totalorder %s86, %s89
      %p98 = scmp.eq.s32.totalorder %s17, 7
      %p99 = por %p97, %p98
      %p100 = scmp.ne.s32.totalorder %s89, %s90
      %p101 = scmp.eq.s32.totalorder %s17, 0
      %p102 = por %p100, %p101
      %p103 = scmp.ne.s32.totalorder %s89, %s90
      %p104 = scmp.eq.s32.totalorder %s18, 7
      %p105 = por %p103, %p104
      %p107 = scmp.ne.s32.totalorder %s90, %s106
      %p108 = scmp.eq.s32.totalorder %s18, 0
      %p109 = por %p107, %p108
      %s110 = ssub.s32 %s19, %s31
      %s111 = ssub.s32 %s20, %s27
      %s112 = sor.u32 %s110, %s111
      %p113 = scmp.eq.s32.totalorder %s112, 0
      %s115 = sadd.s32 %s114, 1
      %s116 = scalar_select %p113, %s114, %s115
      %p119 = pneg %p113
      %p120 = scmp.eq.s32.totalorder %s12, 7
      %p121 = por %p119, %p120
      %p122 = scmp.ne.s32.totalorder %s114, %s117
      %p123 = scmp.eq.s32.totalorder %s12, 0
      %p124 = por %p122, %p123
      %p125 = scmp.ne.s32.totalorder %s114, %s117
      %p126 = scmp.eq.s32.totalorder %s17, 7
      %p127 = por %p125, %p126
      %p128 = scmp.ne.s32.totalorder %s117, %s118
      %p129 = scmp.eq.s32.totalorder %s17, 0
      %p130 = por %p128, %p129
      %p131 = scmp.ne.s32.totalorder %s117, %s118
      %p132 = scmp.eq.s32.totalorder %s18, 7
      %p133 = por %p131, %p132
      %p135 = scmp.ne.s32.totalorder %s118, %s134
      %p136 = scmp.eq.s32.totalorder %s18, 0
      %p137 = por %p135, %p136
      %p138 = scmp.le.s32.totalorder 1, %s12
      %p139 = scmp.lt.s32.totalorder %s12, 9
      %p140 = pnand %p138, %p139
      %p141 = pneg %p140
      // Predicated region
      $region9: #{conv3x3.1} parent=5 // pred_check
        _
      $region10: #{conv3x3.1} parent=5 // pred_check_branch
        %143 = sbr.rel (%p140) target = $region12
      $region11: #{conv3x3.1} parent=5 // pred_region
        %s144 = ssub.s32 %s12, 1
        // Predicated region
        $region13: #{conv3x3.1} parent=11 // pred_check
          %p145 = pneg %p76
        $region14: #{conv3x3.1} parent=11 // pred_check_branch
          %147 = sbr.rel (%p145) target = $region16
        $region15: #{conv3x3.1} parent=11 // pred_region
          %p148 = scmp.lt.s32.totalorder %s22, 0
          %s149 = scalar_select %p148, %s22, 0
          %s150 = smul.addr %s149, 4
          %s151 = scalar_lea.vmem %s1, %s150
        $region16: #{conv3x3.1} parent=11 // pred_fallthru
          _
        // Predicated region
        $region17: #{conv3x3.1} parent=11 // pred_check
          %p152 = pneg %p102
        $region18: #{conv3x3.1} parent=11 // pred_check_branch
          %154 = sbr.rel (%p152) target = $region20
        $region19: #{conv3x3.1} parent=11 // pred_region
          %p155 = scmp.lt.s32.totalorder %s22, 0
          %s156 = scalar_select %p155, %s22, 0
          %s157 = scalar_lea.vmem %s2, %s156
        $region20: #{conv3x3.1} parent=11 // pred_fallthru
          _
      $region12: #{conv3x3.1} parent=5 // pred_fallthru
        _
      %p158 = scmp.lt.s32.totalorder %s12, 8
      // Predicated region
      $region21: #{conv3x3.1} parent=5 // pred_check
        %p159 = pneg %p158
      $region22: #{conv3x3.1} parent=5 // pred_check_branch
        %161 = sbr.rel (%p159) target = $region24
      $region23: #{conv3x3.1} parent=5 // pred_region
        // Predicated region
        $region25: #{conv3x3.1} parent=23 // pred_check
          %p162 = pneg %p44
        $region26: #{conv3x3.1} parent=23 // pred_check_branch
          %164 = sbr.rel (%p162) target = $region28
        $region27: #{conv3x3.1} parent=23 // pred_region
          %s165 = smul.u32 32, %s19
          %p166 = scmp.lt.s32.totalorder %s165, 255
          %s167 = scalar_select %p166, %s165, 255
          %s168 = smul.addr %s167, 4
          %s169 = scalar_lea.vmem %s0, %s168
          %s170 = smul.u32 32, %s19
        $region28: #{conv3x3.1} parent=23 // pred_fallthru
          _
      $region24: #{conv3x3.1} parent=5 // pred_fallthru
        _
      %p171 = scmp.le.s32.totalorder 1, %s12
      %p172 = scmp.lt.s32.totalorder %s12, 9
      %p173 = pnand %p171, %p172
      %p174 = pneg %p173
      // Predicated region
      $region29: #{conv3x3.1} parent=5 // pred_check
        _
      $region30: #{conv3x3.1} parent=5 // pred_check_branch
        %176 = sbr.rel (%p173) target = $region32
      $region31: #{conv3x3.1} parent=5 // pred_region
        %s177 = ssub.s32 %s12, 1
        %s178 = smul.u32 32, %s21
        %p179 = scmp.lt.s32.totalorder %s178, 255
        %s180 = scalar_select %p179, %s178, 255
        %s181 = smul.addr %s180, 4
        %s182 = scalar_lea.vmem %s0, %s181
        %p183 = pneg %p50
        %p184 = pneg %p47
        %p185 = scmp.lt.s32.totalorder %s22, 0
        %s186 = scalar_select %p185, %s22, 0
        %s187 = smul.addr %s186, 4
        %s188 = scalar_lea.vmem %s1, %s187
        %p189 = pneg %p76
        %p190 = pneg %p73
        %p191 = scmp.lt.s32.totalorder %s22, 0
        %s192 = scalar_select %p191, %s22, 0
        %s193 = scalar_lea.vmem %s2, %s192
        %p194 = pneg %p102
        %p195 = pneg %p99
        %p196 = pneg %p130
        %p197 = pneg %p127
        %s198 = sand.u32 %s117, 1
        %s199 = scalar_lea.sflag [#allocation3], %s198
        %s200 = sand.u32 %s117, 1
        %s201 = smul.addr %s200, 256
        %s202 = scalar_lea.vmem [#allocation2], %s201
        %s203 = smul.u32 32, %s21
        %p204 = scmp.lt.s32.totalorder %s203, 255
        %s205 = scalar_select %p204, %s203, 255
        %s206 = smul.addr %s205, 4
        %s207 = scalar_lea.vmem %s0, %s206
        %s208 = smul.u32 32, %s21
        %p209 = scmp.lt.s32.totalorder %s22, 0
        %s210 = scalar_select %p209, %s22, 0
        %s211 = smul.addr %s210, 4
        %s212 = scalar_lea.vmem %s1, %s211
        %p213 = scmp.lt.s32.totalorder %s22, 0
        %s214 = scalar_select %p213, %s22, 0
        %s215 = scalar_lea.vmem %s2, %s214
        %s216 = smul.u32 32, %s21
        %v218 = vld [vmem:[%s207] sm:$0xf]
        %v219 = vld [vmem:[%s207 + $0x4] sm:$0xf]
        %v220 = vld [vmem:[%s207 + $0x8] sm:$0xf]
        %v221 = vld [vmem:[%s207 + $0xc] sm:$0xf]
        %v222 = vld [vmem:[%s207 + $0x10] sm:$0xf]
        %v223 = vld [vmem:[%s207 + $0x14] sm:$0xf]
        %v224 = vld [vmem:[%s207 + $0x18] sm:$0xf]
        %v225 = vld [vmem:[%s207 + $0x1c] sm:$0xf]
        %v226 = vld [vmem:[%s207 + $0x20] sm:$0xf]
        %v227 = vld [vmem:[%s207 + $0x24] sm:$0xf]
        %v228 = vld [vmem:[%s207 + $0x28] sm:$0xf]
        %v229 = vld [vmem:[%s207 + $0x2c] sm:$0xf]
        %v230 = vld [vmem:[%s207 + $0x30] sm:$0xf]
        %v231 = vld [vmem:[%s207 + $0x34] sm:$0xf]
        %v232 = vld [vmem:[%s207 + $0x38] sm:$0xf]
        %v233 = vld [vmem:[%s207 + $0x3c] sm:$0xf]
        %v234 = vld [vmem:[%s207 + $0x40] sm:$0xf]
        %v235 = vld [vmem:[%s207 + $0x44] sm:$0xf]
        %v236 = vld [vmem:[%s207 + $0x48] sm:$0xf]
        %v237 = vld [vmem:[%s207 + $0x4c] sm:$0xf]
        %v238 = vld [vmem:[%s207 + $0x50] sm:$0xf]
        %v239 = vld [vmem:[%s207 + $0x54] sm:$0xf]
        %v240 = vld [vmem:[%s207 + $0x58] sm:$0xf]
        %v241 = vld [vmem:[%s207 + $0x5c] sm:$0xf]
        %v242 = vld [vmem:[%s207 + $0x60] sm:$0xf]
        %v243 = vld [vmem:[%s207 + $0x64] sm:$0xf]
        %v244 = vld [vmem:[%s207 + $0x68] sm:$0xf]
        %v245 = vld [vmem:[%s207 + $0x6c] sm:$0xf]
        %v246 = vld [vmem:[%s207 + $0x70] sm:$0xf]
        %v247 = vld [vmem:[%s207 + $0x74] sm:$0xf]
        %v248 = vld [vmem:[%s207 + $0x78] sm:$0xf]
        %v249 = vld [vmem:[%s207 + $0x7c] sm:$0xf]
        %v250 = vld [vmem:[%s212] sm:$0xf]
        %v251 = vld [vmem:[%s212 + $0x4] sm:$0xf]
        %v252 = vld [vmem:[%s212 + $0x8] sm:$0xf]
        %v253 = vld [vmem:[%s212 + $0xc] sm:$0x3]
        %v254 = vld [vmem:[%s215] sm:$0x1]
        %v256 = vperm.slane %v254, 0
        %v290 = vunpack.c.l.b16 %v218
        %v291 = vunpack.c.l.b16 %v219
        %v292 = vunpack.c.l.b16 %v220
        %v293 = vunpack.c.l.b16 %v221
        %v294 = vunpack.c.l.b16 %v222
        %v295 = vunpack.c.l.b16 %v223
        %v296 = vunpack.c.l.b16 %v224
        %v297 = vunpack.c.l.b16 %v225
        %v298 = vunpack.c.l.b16 %v226
        %v299 = vunpack.c.l.b16 %v227
        %v300 = vunpack.c.l.b16 %v228
        %v301 = vunpack.c.l.b16 %v229
        %v302 = vunpack.c.l.b16 %v230
        %v303 = vunpack.c.l.b16 %v231
        %v304 = vunpack.c.l.b16 %v232
        %v305 = vunpack.c.l.b16 %v233
        %v306 = vunpack.c.l.b16 %v234
        %v307 = vunpack.c.l.b16 %v235
        %v308 = vunpack.c.l.b16 %v236
        %v309 = vunpack.c.l.b16 %v237
        %v310 = vunpack.c.l.b16 %v238
        %v311 = vunpack.c.l.b16 %v239
        %v312 = vunpack.c.l.b16 %v240
        %v313 = vunpack.c.l.b16 %v241
        %v314 = vunpack.c.l.b16 %v242
        %v315 = vunpack.c.l.b16 %v243
        %v316 = vunpack.c.l.b16 %v244
        %v317 = vunpack.c.l.b16 %v245
        %v318 = vunpack.c.l.b16 %v246
        %v319 = vunpack.c.l.b16 %v247
        %v320 = vunpack.c.l.b16 %v248
        %v321 = vunpack.c.l.b16 %v249
        %v322 = vpack.c.b16 %v291, %v290
        %v323 = vpack.c.b16 %v293, %v292
        %v324 = vpack.c.b16 %v295, %v294
        %v325 = vpack.c.b16 %v297, %v296
        %v326 = vpack.c.b16 %v299, %v298
        %v327 = vpack.c.b16 %v301, %v300
        %v328 = vpack.c.b16 %v303, %v302
        %v329 = vpack.c.b16 %v305, %v304
        %v330 = vpack.c.b16 %v307, %v306
        %v331 = vpack.c.b16 %v309, %v308
        %v332 = vpack.c.b16 %v311, %v310
        %v333 = vpack.c.b16 %v313, %v312
        %v334 = vpack.c.b16 %v315, %v314
        %v335 = vpack.c.b16 %v317, %v316
        %v336 = vpack.c.b16 %v319, %v318
        %v337 = vpack.c.b16 %v321, %v320
        %v342 = vunpack.c.l.b16 %v250
        %v343 = vunpack.c.l.b16 %v251
        %v344 = vunpack.c.l.b16 %v252
        %v345 = vunpack.c.l.b16 %v253
        %v346 = vpack.c.b16 %v343, %v342
        %v347 = vpack.c.b16 %v345, %v344
        %vm349 = vcmask 220160
        %v351 = vsel %vm349, %v322, 0
        %v354 = vsel %vm349, %v323, 0
        %v357 = vsel %vm349, %v324, 0
        %v360 = vsel %vm349, %v325, 0
        %v363 = vsel %vm349, %v326, 0
        %v366 = vsel %vm349, %v327, 0
        %v369 = vsel %vm349, %v328, 0
        %v372 = vsel %vm349, %v329, 0
        %v375 = vsel %vm349, %v330, 0
        %v378 = vsel %vm349, %v331, 0
        %v381 = vsel %vm349, %v332, 0
        %v384 = vsel %vm349, %v333, 0
        %v387 = vsel %vm349, %v334, 0
        %v390 = vsel %vm349, %v335, 0
        %v393 = vsel %vm349, %v336, 0
        %v396 = vsel %vm349, %v337, 0
        %vm398 = vcmask 1044480
        %vm399 = vcmask 1045504
        %v400 = vsel %vm398, 4294967295, 65535
        %v401 = vsel %vm399, %v400, 0
        %v403 = vand.u32 %v347, %v401
        %405 = vmatpush.bf16.msra.mxu0 0
        %406 = vmatpush.bf16.msra.mxu0 0
        %407 = vmatpush.bf16.msra.mxu0 0
        %408 = vmatpush.bf16.msra.mxu0 0
        %409 = vmatpush.bf16.msra.mxu0 0
        %410 = vmatpush.bf16.msra.mxu0 0
        %411 = vmatpush.bf16.msra.mxu0 %v403
        %412 = vmatpush.bf16.msra.mxu0 %v346
        %413 = vmatmul.bf16.gmra.mxu0 %v351
        %v414 = vpop.f32.mrf.mxu0
        %v415 = vadd.f32 %v256, %v414
        %v416 = vpop.f32.mrf.mxu0
        %v417 = vadd.f32 %v256, %v416
        %418 = vmatmul.bf16.gmra.mxu0 %v354
        %v419 = vpop.f32.mrf.mxu0
        %v420 = vadd.f32 %v256, %v419
        %v421 = vpop.f32.mrf.mxu0
        %v422 = vadd.f32 %v256, %v421
        %423 = vmatmul.bf16.gmra.mxu0 %v357
        %v424 = vpop.f32.mrf.mxu0
        %v425 = vadd.f32 %v256, %v424
        %v426 = vpop.f32.mrf.mxu0
        %v427 = vadd.f32 %v256, %v426
        %428 = vmatmul.bf16.gmra.mxu0 %v360
        %v429 = vpop.f32.mrf.mxu0
        %v430 = vadd.f32 %v256, %v429
        %v431 = vpop.f32.mrf.mxu0
        %v432 = vadd.f32 %v256, %v431
        %433 = vmatmul.bf16.gmra.mxu0 %v363
        %v434 = vpop.f32.mrf.mxu0
        %v435 = vadd.f32 %v256, %v434
        %v436 = vpop.f32.mrf.mxu0
        %v437 = vadd.f32 %v256, %v436
        %438 = vmatmul.bf16.gmra.mxu0 %v366
        %v439 = vpop.f32.mrf.mxu0
        %v440 = vadd.f32 %v256, %v439
        %v441 = vpop.f32.mrf.mxu0
        %v442 = vadd.f32 %v256, %v441
        %443 = vmatmul.bf16.gmra.mxu0 %v369
        %v444 = vpop.f32.mrf.mxu0
        %v445 = vadd.f32 %v256, %v444
        %v446 = vpop.f32.mrf.mxu0
        %v447 = vadd.f32 %v256, %v446
        %448 = vmatmul.bf16.gmra.mxu0 %v372
        %v449 = vpop.f32.mrf.mxu0
        %v450 = vadd.f32 %v256, %v449
        %v451 = vpop.f32.mrf.mxu0
        %v452 = vadd.f32 %v256, %v451
        %453 = vmatmul.bf16.gmra.mxu0 %v375
        %v454 = vpop.f32.mrf.mxu0
        %v455 = vadd.f32 %v256, %v454
        %v456 = vpop.f32.mrf.mxu0
        %v457 = vadd.f32 %v256, %v456
        %458 = vmatmul.bf16.gmra.mxu0 %v378
        %v459 = vpop.f32.mrf.mxu0
        %v460 = vadd.f32 %v256, %v459
        %v461 = vpop.f32.mrf.mxu0
        %v462 = vadd.f32 %v256, %v461
        %463 = vmatmul.bf16.gmra.mxu0 %v381
        %v464 = vpop.f32.mrf.mxu0
        %v465 = vadd.f32 %v256, %v464
        %v466 = vpop.f32.mrf.mxu0
        %v467 = vadd.f32 %v256, %v466
        %468 = vmatmul.bf16.gmra.mxu0 %v384
        %v469 = vpop.f32.mrf.mxu0
        %v470 = vadd.f32 %v256, %v469
        %v471 = vpop.f32.mrf.mxu0
        %v472 = vadd.f32 %v256, %v471
        %473 = vmatmul.bf16.gmra.mxu0 %v387
        %v474 = vpop.f32.mrf.mxu0
        %v475 = vadd.f32 %v256, %v474
        %v476 = vpop.f32.mrf.mxu0
        %v477 = vadd.f32 %v256, %v476
        %478 = vmatmul.bf16.gmra.mxu0 %v390
        %v479 = vpop.f32.mrf.mxu0
        %v480 = vadd.f32 %v256, %v479
        %v481 = vpop.f32.mrf.mxu0
        %v482 = vadd.f32 %v256, %v481
        %483 = vmatmul.bf16.gmra.mxu0 %v393
        %v484 = vpop.f32.mrf.mxu0
        %v485 = vadd.f32 %v256, %v484
        %v486 = vpop.f32.mrf.mxu0
        %v487 = vadd.f32 %v256, %v486
        %488 = vmatmul.bf16.gmra.mxu0 %v396
        %v489 = vpop.f32.mrf.mxu0
        %v490 = vadd.f32 %v256, %v489
        %v491 = vpop.f32.mrf.mxu0
        %v492 = vadd.f32 %v256, %v491
        %493 = vdwg.mxu0
        %v494 = vmax.f32 %v415, 0.0
        %v495 = vmax.f32 %v417, 0.0
        %v496 = vmax.f32 %v420, 0.0
        %v497 = vmax.f32 %v422, 0.0
        %v498 = vmax.f32 %v425, 0.0
        %v499 = vmax.f32 %v427, 0.0
        %v500 = vmax.f32 %v430, 0.0
        %v501 = vmax.f32 %v432, 0.0
        %v502 = vmax.f32 %v435, 0.0
        %v503 = vmax.f32 %v437, 0.0
        %v504 = vmax.f32 %v440, 0.0
        %v505 = vmax.f32 %v442, 0.0
        %v506 = vmax.f32 %v445, 0.0
        %v507 = vmax.f32 %v447, 0.0
        %v508 = vmax.f32 %v450, 0.0
        %v509 = vmax.f32 %v452, 0.0
        %v510 = vmax.f32 %v455, 0.0
        %v511 = vmax.f32 %v457, 0.0
        %v512 = vmax.f32 %v460, 0.0
        %v513 = vmax.f32 %v462, 0.0
        %v514 = vmax.f32 %v465, 0.0
        %v515 = vmax.f32 %v467, 0.0
        %v516 = vmax.f32 %v470, 0.0
        %v517 = vmax.f32 %v472, 0.0
        %v518 = vmax.f32 %v475, 0.0
        %v519 = vmax.f32 %v477, 0.0
        %v520 = vmax.f32 %v480, 0.0
        %v521 = vmax.f32 %v482, 0.0
        %v522 = vmax.f32 %v485, 0.0
        %v523 = vmax.f32 %v487, 0.0
        %v524 = vmax.f32 %v490, 0.0
        %v525 = vmax.f32 %v492, 0.0
        %vm526 = vcmask 523264
        %527 = vst.msk [vmem:[%s202] sm:$0xff] %vm526, %v494
        %528 = vst.msk [vmem:[%s202 + $0x8] sm:$0xff] %vm526, %v495
        %529 = vst.msk [vmem:[%s202 + $0x10] sm:$0xff] %vm526, %v496
        %530 = vst.msk [vmem:[%s202 + $0x18] sm:$0xff] %vm526, %v497
        %531 = vst.msk [vmem:[%s202 + $0x20] sm:$0xff] %vm526, %v498
        %532 = vst.msk [vmem:[%s202 + $0x28] sm:$0xff] %vm526, %v499
        %533 = vst.msk [vmem:[%s202 + $0x30] sm:$0xff] %vm526, %v500
        %534 = vst.msk [vmem:[%s202 + $0x38] sm:$0xff] %vm526, %v501
        %535 = vst.msk [vmem:[%s202 + $0x40] sm:$0xff] %vm526, %v502
        %536 = vst.msk [vmem:[%s202 + $0x48] sm:$0xff] %vm526, %v503
        %537 = vst.msk [vmem:[%s202 + $0x50] sm:$0xff] %vm526, %v504
        %538 = vst.msk [vmem:[%s202 + $0x58] sm:$0xff] %vm526, %v505
        %539 = vst.msk [vmem:[%s202 + $0x60] sm:$0xff] %vm526, %v506
        %540 = vst.msk [vmem:[%s202 + $0x68] sm:$0xff] %vm526, %v507
        %541 = vst.msk [vmem:[%s202 + $0x70] sm:$0xff] %vm526, %v508
        %542 = vst.msk [vmem:[%s202 + $0x78] sm:$0xff] %vm526, %v509
        %543 = vst.msk [vmem:[%s202 + $0x80] sm:$0xff] %vm526, %v510
        %544 = vst.msk [vmem:[%s202 + $0x88] sm:$0xff] %vm526, %v511
        %545 = vst.msk [vmem:[%s202 + $0x90] sm:$0xff] %vm526, %v512
        %546 = vst.msk [vmem:[%s202 + $0x98] sm:$0xff] %vm526, %v513
        %547 = vst.msk [vmem:[%s202 + $0xa0] sm:$0xff] %vm526, %v514
        %548 = vst.msk [vmem:[%s202 + $0xa8] sm:$0xff] %vm526, %v515
        %549 = vst.msk [vmem:[%s202 + $0xb0] sm:$0xff] %vm526, %v516
        %550 = vst.msk [vmem:[%s202 + $0xb8] sm:$0xff] %vm526, %v517
        %551 = vst.msk [vmem:[%s202 + $0xc0] sm:$0xff] %vm526, %v518
        %552 = vst.msk [vmem:[%s202 + $0xc8] sm:$0xff] %vm526, %v519
        %553 = vst.msk [vmem:[%s202 + $0xd0] sm:$0xff] %vm526, %v520
        %554 = vst.msk [vmem:[%s202 + $0xd8] sm:$0xff] %vm526, %v521
        %555 = vst.msk [vmem:[%s202 + $0xe0] sm:$0xff] %vm526, %v522
        %556 = vst.msk [vmem:[%s202 + $0xe8] sm:$0xff] %vm526, %v523
        %557 = vst.msk [vmem:[%s202 + $0xf0] sm:$0xff] %vm526, %v524
        %558 = vst.msk [vmem:[%s202 + $0xf8] sm:$0xff] %vm526, %v525
        %s559 = sand.u32 %s117, 1
        %s560 = scalar_lea.sflag [#allocation3], %s559
        %s561 = sand.u32 %s117, 1
        %s562 = smul.addr %s561, 256
        %s563 = scalar_lea.vmem [#allocation2], %s562
        // Predicated region
        $region33: #{conv3x3.1} parent=31 // pred_check
          %p564 = pneg %p127
        $region34: #{conv3x3.1} parent=31 // pred_check_branch
          %566 = sbr.rel (%p564) target = $region36
        $region35: #{conv3x3.1} parent=31 // pred_region
          %s567 = smul.u32 32, %s21
          %569 = vsyncadd %s560, 0
          %s570 = sadd.s32 %s22, %s567
          %s571 = smul.addr %s570, 8
          %s572 = scalar_lea.hbm %s3, %s571
          %s573 = sshll.u32 %s563, 4
          %s574 = int_to_ptr.vmem [resolvable:$true] %s573
          %s575 = sshll.u32 %s572, 4
          %s576 = int_to_ptr.hbm [resolvable:$true] %s575
          %581 = dma.vmem_to_hbm [thread:$0]  %s574, 4096, %s576, %s560, 128, 128, 8
        $region36: #{conv3x3.1} parent=31 // pred_fallthru
          _
      $region32: #{conv3x3.1} parent=5 // pred_fallthru
        _
      %p582 = scmp.le.s32.totalorder 2, %s12
      // Predicated region
      $region37: #{conv3x3.1} parent=5 // pred_check
        %p583 = pneg %p582
      $region38: #{conv3x3.1} parent=5 // pred_check_branch
        %585 = sbr.rel (%p583) target = $region40
      $region39: #{conv3x3.1} parent=5 // pred_region
        %s586 = ssub.s32 %s12, 2
        // Predicated region
        $region41: #{conv3x3.1} parent=39 // pred_check
          %p587 = pneg %p133
        $region42: #{conv3x3.1} parent=39 // pred_check_branch
          %589 = sbr.rel (%p587) target = $region44
        $region43: #{conv3x3.1} parent=39 // pred_region
          %s590 = sand.u32 %s118, 1
          %s591 = scalar_lea.sflag [#allocation3], %s590
          %s592 = sand.u32 %s118, 1
          %s593 = smul.addr %s592, 256
          %s594 = scalar_lea.vmem [#allocation2], %s593
          %596 = dma.done %s591, 4096
        $region44: #{conv3x3.1} parent=39 // pred_fallthru
          _
      $region40: #{conv3x3.1} parent=5 // pred_fallthru
        _
    $region6: #{conv3x3.1} parent=1 // loop_footer
      %s16 = sadd.s32 1, %s12
    $region7: #{conv3x3.1} parent=1 // loop_footer_branch
      %11 = sbr.rel target = $region3
    $region8: #{conv3x3.1} parent=1 // loop_exit
      _
    %597 = vsyncpa [#allocation3], 1
    %s598 = scalar_lea.sflag [#allocation3], 1
    %599 = vsyncpa %s598, 1

</llo_original>
